<compile_context>
chip_gen: v6e
topology: v6e:2x2x1
jax: 0.10.0
libtpu: 0.0.40
codegen_flags: <defaults>
</compile_context>

<pallas_src>
import functools

import jax
import jax.numpy as jnp
from jax import lax
from jax.experimental import pallas as pl
from jax.experimental.pallas import tpu as pltpu


def _double_conv_kernel(x_ref, w1_ref, s1_ref, b1_ref, w2_ref, s2_ref, b2_ref,
                        o_ref, xp_ref, yp_ref, *, H):
    """One grid step = one batch element.

    x_ref : (1, H, W*Cin)        bf16  flattened-NHWC input tile (unpadded)
    w1_ref: (3, W*Cin,  W*Cout)  bf16  width-folded block-banded conv1 weights
    w2_ref: (3, W*Cout, W*Cout)  bf16  width-folded block-banded conv2 weights
    s*/b* : (1, W*Cout)          f32   folded BN scale/bias, per output column
    o_ref : (1, H, W*Cout)       bf16  lane-dense output tile
    xp_ref: (H+2, W*Cin)         bf16  height-halo padded input scratch
    yp_ref: (H+2, W*Cout)        bf16  height-halo padded intermediate scratch
    """
    WCi = xp_ref.shape[1]
    WCo = yp_ref.shape[1]

    # SAME zero-padding along H: only the two halo rows of each scratch need to
    # be zero.  Four tiny single-row stores per step (no full-scratch sweeps).
    xp_ref[pl.ds(0, 1), :] = jnp.zeros((1, WCi), xp_ref.dtype)
    xp_ref[pl.ds(H + 1, 1), :] = jnp.zeros((1, WCi), xp_ref.dtype)
    yp_ref[pl.ds(0, 1), :] = jnp.zeros((1, WCo), yp_ref.dtype)
    yp_ref[pl.ds(H + 1, 1), :] = jnp.zeros((1, WCo), yp_ref.dtype)

    def conv_bn_relu(src_ref, w_ref, s_ref, b_ref):
        # One bf16 MXU matmul per kernel row dy, f32 accumulation.  The bf16
        # scratch rows feed the MXU directly (no per-dy casts).  The width halo
        # is already folded into the band structure of the weights.
        acc = jnp.dot(src_ref[pl.ds(0, H), :], w_ref[0],
                      preferred_element_type=jnp.float32)
        for dy in (1, 2):
            acc = acc + jnp.dot(src_ref[pl.ds(dy, H), :], w_ref[dy],
                                preferred_element_type=jnp.float32)
        # Fused inference BatchNorm + ReLU (f32 epilogue on the f32 accumulator).
        return jnp.maximum(acc * s_ref[...] + b_ref[...], 0.0)

    # Body rows [1, H] <- input.  bf16 -> bf16, no cast.
    xp_ref[pl.ds(1, H), :] = x_ref[0]

    # Conv1 + BN1 + ReLU.  Intermediate stays in VMEM (single f32->bf16 cast,
    # matching the reference's rounding of the intermediate).
    y1 = conv_bn_relu(xp_ref, w1_ref, s1_ref, b1_ref)
    yp_ref[pl.ds(1, H), :] = y1.astype(jnp.bfloat16)

    # Conv2 + BN2 + ReLU.  Lane-dense bf16 store (W*Cout is a multiple of 128
    # here -> unmasked full-lane vst).
    y2 = conv_bn_relu(yp_ref, w2_ref, s2_ref, b2_ref)
    o_ref[0] = y2.astype(o_ref.dtype)


def _width_fold_conv_weights(w4, W):
    """(3, 3, Cin, Cout) conv weights -> (3, W*Cin, W*Cout) bf16 block-banded
    matrices B with B[dy][wi*Cin+ci, wo*Cout+co] = w4[dy, wi-wo+1, ci, co]
    (zero outside the band), i.e. 'same' padding along W is built into the weights."""
    _, _, cin, cout = w4.shape
    wi = jnp.arange(W)[:, None]          # input column
    wo = jnp.arange(W)[None, :]          # output column
    dx = wi - wo + 1                     # (W, W)
    valid = (dx >= 0) & (dx <= 2)
    blk = w4[:, jnp.clip(dx, 0, 2)]      # (3, W, W, Cin, Cout)
    blk = blk * valid[None, :, :, None, None].astype(w4.dtype)
    b = jnp.transpose(blk, (0, 1, 3, 2, 4)).reshape(3, W * cin, W * cout)
    return b.astype(jnp.bfloat16)


def double_conv_nhwc(x_nhwc, params, *, out_dtype=jnp.bfloat16,
                     vmem_limit_bytes=48 * 1024 * 1024):
    """Fused DoubleConv on NHWC input.  Returns NHWC `out_dtype` (default bf16)."""
    N, H, W, Cin = x_nhwc.shape
    Cout = params["s1"].shape[0]
    WCi, WCo = W * Cin, W * Cout
    # Perf note (not a correctness requirement): W*Cout should be a multiple of
    # 128 for unmasked lane-dense output stores (true here: 16*8 = 128).

    # bf16 MXU operands (f32 accumulation in-kernel); flatten (W, C) onto the lane
    # axis — a free contiguous reshape in HBM, no transpose.
    x_flat = x_nhwc.astype(jnp.bfloat16).reshape(N, H, WCi)
    w1 = _width_fold_conv_weights(params["w1"], W)            # (3, WCi, WCo)
    w2 = _width_fold_conv_weights(params["w2"], W)            # (3, WCo, WCo)
    # Folded BN scale/bias tiled to one value per output column (co = col % Cout).
    s1 = jnp.tile(params["s1"].astype(jnp.float32), W).reshape(1, WCo)
    b1 = jnp.tile(params["b1"].astype(jnp.float32), W).reshape(1, WCo)
    s2 = jnp.tile(params["s2"].astype(jnp.float32), W).reshape(1, WCo)
    b2 = jnp.tile(params["b2"].astype(jnp.float32), W).reshape(1, WCo)

    kernel = functools.partial(_double_conv_kernel, H=H)
    out = pl.pallas_call(
        kernel,
        out_shape=jax.ShapeDtypeStruct((N, H, WCo), out_dtype),
        grid_spec=pltpu.PrefetchScalarGridSpec(
            num_scalar_prefetch=0,
            grid=(N,),
            in_specs=[
                pl.BlockSpec((1, H, WCi), lambda n: (n, 0, 0)),
                pl.BlockSpec((3, WCi, WCo), lambda n: (0, 0, 0)),
                pl.BlockSpec((1, WCo), lambda n: (0, 0)),
                pl.BlockSpec((1, WCo), lambda n: (0, 0)),
                pl.BlockSpec((3, WCo, WCo), lambda n: (0, 0, 0)),
                pl.BlockSpec((1, WCo), lambda n: (0, 0)),
                pl.BlockSpec((1, WCo), lambda n: (0, 0)),
            ],
            out_specs=pl.BlockSpec((1, H, WCo), lambda n: (n, 0, 0)),
            scratch_shapes=[
                pltpu.VMEM((H + 2, WCi), jnp.bfloat16),   # padded input tile
                pltpu.VMEM((H + 2, WCo), jnp.bfloat16),   # padded intermediate
            ],
        ),
        compiler_params=pltpu.CompilerParams(
            dimension_semantics=("parallel",),
            # 48 MiB leaves headroom on v7x (64 MiB/TC); raise to ~96-100 MiB on
            # v5e/v6e for whole-image blocks at larger shapes.
            vmem_limit_bytes=vmem_limit_bytes,
        ),
    )(x_flat, w1, s1, b1, w2, s2, b2)
    return out.reshape(N, H, W, Cout)


def double_conv(x_nchw, params):
    """PyTorch-facing DoubleConv: NCHW in, NCHW out (bf16).

    The kernel itself is NHWC (channels on lanes).  In a full UNET keep the
    activations NHWC end-to-end and drop these boundary transposes.
    """
    x = jnp.transpose(x_nchw, (0, 2, 3, 1))                    # NCHW -> NHWC
    y = double_conv_nhwc(x, params)
    return jnp.transpose(y, (0, 3, 1, 2))                      # NHWC -> NCHW


def make_double_conv_params(key, in_channels, out_channels):
    """Deterministic synthetic parameters matching DoubleConv.__init__ shapes."""
    ks = jax.random.split(key, 10)
    eps = 1e-5

    def bn_fold(kg, kb, km, kv, c):
        gamma = jax.random.normal(kg, (c,), jnp.float32) * 0.1 + 1.0
        beta = jax.random.normal(kb, (c,), jnp.float32) * 0.1
        mean = jax.random.normal(km, (c,), jnp.float32) * 0.1
        var = jax.random.uniform(kv, (c,), jnp.float32, 0.5, 1.5)
        scale = gamma / jnp.sqrt(var + eps)
        bias = beta - mean * scale
        return scale, bias

    # Conv weights in (kh, kw, cin, cout) layout for the NHWC kernel.
    w1 = jax.random.normal(ks[0], (3, 3, in_channels, out_channels), jnp.float32) * 0.1
    w2 = jax.random.normal(ks[1], (3, 3, out_channels, out_channels), jnp.float32) * 0.1
    s1, b1 = bn_fold(ks[2], ks[3], ks[4], ks[5], out_channels)
    s2, b2 = bn_fold(ks[6], ks[7], ks[8], ks[9], out_channels)
    return dict(w1=w1, s1=s1, b1=b1, w2=w2, s2=s2, b2=b2)


def _round_bf16(a):
    return a.astype(jnp.bfloat16).astype(jnp.float32)


def _reference(x_nchw, params):
    """Pure-JAX reference (lax.conv).  Operands are rounded to bf16 at the same
    points as the kernel (input / weights / intermediate) with f32 accumulation,
    so it tracks the bf16-MXU kernel closely."""
    def block(x, w, s, b):
        w_oihw = jnp.transpose(_round_bf16(w), (3, 2, 0, 1))   # (kh,kw,ci,co)->OIHW
        y = lax.conv_general_dilated(
            x, w_oihw, window_strides=(1, 1), padding="SAME",
            dimension_numbers=("NCHW", "OIHW", "NCHW"),
            precision=lax.Precision.HIGHEST)
        y = y * s[None, :, None, None] + b[None, :, None, None]
        return jnp.maximum(y, 0.0)

    y = block(_round_bf16(x_nchw), params["w1"], params["s1"], params["b1"])
    return block(_round_bf16(y), params["w2"], params["s2"], params["b2"])


if __name__ == "__main__":
    key = jax.random.PRNGKey(0)
    k_x, k_p = jax.random.split(key)

    N, Cin, Cout, H, W = 2, 4, 8, 16, 16
    x = jax.random.normal(k_x, (N, Cin, H, W), jnp.float32)
    params = make_double_conv_params(k_p, Cin, Cout)

    out = jax.block_until_ready(double_conv(x, params))
    ref = _reference(x, params)

    assert out.shape == (N, Cout, H, W)
    assert out.dtype == jnp.bfloat16
    # bf16 operands + bf16 output (f32 accumulation) vs bf16-rounded f32 reference.
    assert jnp.allclose(out.astype(jnp.float32), ref, atol=1e-2, rtol=1e-2), \
        "mismatch vs reference"

    print("KERNEL_OK")
</pallas_src>

<mosaic_0001>
module attributes {stable_mosaic.version = 11 : i64} {
  func.func @_double_conv_kernel(%arg0: i32, %arg1: memref<1x16x64xbf16, #tpu.memory_space<vmem>>, %arg2: memref<3x64x128xbf16, #tpu.memory_space<vmem>>, %arg3: memref<1x128xf32, #tpu.memory_space<vmem>>, %arg4: memref<1x128xf32, #tpu.memory_space<vmem>>, %arg5: memref<3x128x128xbf16, #tpu.memory_space<vmem>>, %arg6: memref<1x128xf32, #tpu.memory_space<vmem>>, %arg7: memref<1x128xf32, #tpu.memory_space<vmem>>, %arg8: memref<1x16x128xbf16, #tpu.memory_space<vmem>>, %arg9: memref<18x64xbf16, #tpu.memory_space<vmem>>, %arg10: memref<18x128xbf16, #tpu.memory_space<vmem>>) attributes {dimension_semantics = [#tpu.dimension_semantics<parallel>], iteration_bounds = array<i64: 2>, scalar_prefetch = 0 : i64, scratch_operands = 2 : i64, tpu.core_type = #tpu.core_type<tc>, window_params = [{transform_indices = @transform_0, window_bounds = array<i64: 1, 16, 64>}, {pipeline_mode = #tpu.pipeline_mode<synchronous>, transform_indices = @transform_1, window_bounds = array<i64: 3, 64, 128>}, {pipeline_mode = #tpu.pipeline_mode<synchronous>, transform_indices = @transform_2, window_bounds = array<i64: 1, 128>}, {pipeline_mode = #tpu.pipeline_mode<synchronous>, transform_indices = @transform_3, window_bounds = array<i64: 1, 128>}, {pipeline_mode = #tpu.pipeline_mode<synchronous>, transform_indices = @transform_4, window_bounds = array<i64: 3, 128, 128>}, {pipeline_mode = #tpu.pipeline_mode<synchronous>, transform_indices = @transform_5, window_bounds = array<i64: 1, 128>}, {pipeline_mode = #tpu.pipeline_mode<synchronous>, transform_indices = @transform_6, window_bounds = array<i64: 1, 128>}, {transform_indices = @transform_7, window_bounds = array<i64: 1, 16, 128>}]} {
    %cst = arith.constant 0.000000e+00 : bf16
    %0 = vector.broadcast %cst : bf16 to vector<1x64xbf16>
    %c0 = arith.constant 0 : index
    %c0_0 = arith.constant 0 : index
    %1 = vector.load %arg9[%c0, %c0_0] : memref<18x64xbf16, #tpu.memory_space<vmem>>, vector<1x64xbf16>
    tpu.vector_store %arg9[%c0, %c0_0], %0 {strides = array<i32>} : memref<18x64xbf16, #tpu.memory_space<vmem>>, vector<1x64xbf16>,
    %cst_1 = arith.constant 0.000000e+00 : bf16
    %2 = vector.broadcast %cst_1 : bf16 to vector<1x64xbf16>
    %c17 = arith.constant 17 : index
    %c0_2 = arith.constant 0 : index
    %3 = vector.load %arg9[%c17, %c0_2] : memref<18x64xbf16, #tpu.memory_space<vmem>>, vector<1x64xbf16>
    tpu.vector_store %arg9[%c17, %c0_2], %2 {strides = array<i32>} : memref<18x64xbf16, #tpu.memory_space<vmem>>, vector<1x64xbf16>,
    %cst_3 = arith.constant 0.000000e+00 : bf16
    %4 = vector.broadcast %cst_3 : bf16 to vector<1x128xbf16>
    %c0_4 = arith.constant 0 : index
    %c0_5 = arith.constant 0 : index
    %5 = vector.load %arg10[%c0_4, %c0_5] : memref<18x128xbf16, #tpu.memory_space<vmem>>, vector<1x128xbf16>
    tpu.vector_store %arg10[%c0_4, %c0_5], %4 {strides = array<i32>} : memref<18x128xbf16, #tpu.memory_space<vmem>>, vector<1x128xbf16>,
    %cst_6 = arith.constant 0.000000e+00 : bf16
    %6 = vector.broadcast %cst_6 : bf16 to vector<1x128xbf16>
    %c17_7 = arith.constant 17 : index
    %c0_8 = arith.constant 0 : index
    %7 = vector.load %arg10[%c17_7, %c0_8] : memref<18x128xbf16, #tpu.memory_space<vmem>>, vector<1x128xbf16>
    tpu.vector_store %arg10[%c17_7, %c0_8], %6 {strides = array<i32>} : memref<18x128xbf16, #tpu.memory_space<vmem>>, vector<1x128xbf16>,
    %c0_9 = arith.constant 0 : index
    %c0_10 = arith.constant 0 : index
    %c0_11 = arith.constant 0 : index
    %8 = vector.load %arg1[%c0_9, %c0_10, %c0_11] : memref<1x16x64xbf16, #tpu.memory_space<vmem>>, vector<1x16x64xbf16>
    %9 = vector.shape_cast %8 : vector<1x16x64xbf16> to vector<16x64xbf16>
    %c1 = arith.constant 1 : index
    %c0_12 = arith.constant 0 : index
    %10 = vector.load %arg9[%c1, %c0_12] : memref<18x64xbf16, #tpu.memory_space<vmem>>, vector<16x64xbf16>
    tpu.vector_store %arg9[%c1, %c0_12], %9 {strides = array<i32>} : memref<18x64xbf16, #tpu.memory_space<vmem>>, vector<16x64xbf16>,
    %c0_13 = arith.constant 0 : index
    %c0_14 = arith.constant 0 : index
    %11 = vector.load %arg9[%c0_13, %c0_14] : memref<18x64xbf16, #tpu.memory_space<vmem>>, vector<16x64xbf16>
    %c0_15 = arith.constant 0 : index
    %c0_16 = arith.constant 0 : index
    %c0_17 = arith.constant 0 : index
    %12 = vector.load %arg2[%c0_15, %c0_16, %c0_17] : memref<3x64x128xbf16, #tpu.memory_space<vmem>>, vector<1x64x128xbf16>
    %13 = vector.shape_cast %12 : vector<1x64x128xbf16> to vector<64x128xbf16>
    %cst_18 = arith.constant dense<0.000000e+00> : vector<16x128xf32>
    %14 = tpu.matmul %11, %13, %cst_18 {dimension_numbers = #tpu.dot_dimension_numbers<[1], [0], [0], [1], [0, 0, 1, 1], [], []>} : vector<16x64xbf16>, vector<64x128xbf16>, vector<16x128xf32> -> vector<16x128xf32>
    %c1_19 = arith.constant 1 : index
    %c0_20 = arith.constant 0 : index
    %15 = vector.load %arg9[%c1_19, %c0_20] : memref<18x64xbf16, #tpu.memory_space<vmem>>, vector<16x64xbf16>
    %c1_21 = arith.constant 1 : index
    %c0_22 = arith.constant 0 : index
    %c0_23 = arith.constant 0 : index
    %16 = vector.load %arg2[%c1_21, %c0_22, %c0_23] : memref<3x64x128xbf16, #tpu.memory_space<vmem>>, vector<1x64x128xbf16>
    %17 = vector.shape_cast %16 : vector<1x64x128xbf16> to vector<64x128xbf16>
    %cst_24 = arith.constant dense<0.000000e+00> : vector<16x128xf32>
    %18 = tpu.matmul %15, %17, %cst_24 {dimension_numbers = #tpu.dot_dimension_numbers<[1], [0], [0], [1], [0, 0, 1, 1], [], []>} : vector<16x64xbf16>, vector<64x128xbf16>, vector<16x128xf32> -> vector<16x128xf32>
    %19 = arith.addf %14, %18 : vector<16x128xf32>
    %c2 = arith.constant 2 : index
    %c0_25 = arith.constant 0 : index
    %20 = vector.load %arg9[%c2, %c0_25] : memref<18x64xbf16, #tpu.memory_space<vmem>>, vector<16x64xbf16>
    %c2_26 = arith.constant 2 : index
    %c0_27 = arith.constant 0 : index
    %c0_28 = arith.constant 0 : index
    %21 = vector.load %arg2[%c2_26, %c0_27, %c0_28] : memref<3x64x128xbf16, #tpu.memory_space<vmem>>, vector<1x64x128xbf16>
    %22 = vector.shape_cast %21 : vector<1x64x128xbf16> to vector<64x128xbf16>
    %cst_29 = arith.constant dense<0.000000e+00> : vector<16x128xf32>
    %23 = tpu.matmul %20, %22, %cst_29 {dimension_numbers = #tpu.dot_dimension_numbers<[1], [0], [0], [1], [0, 0, 1, 1], [], []>} : vector<16x64xbf16>, vector<64x128xbf16>, vector<16x128xf32> -> vector<16x128xf32>
    %24 = arith.addf %19, %23 : vector<16x128xf32>
    %c0_30 = arith.constant 0 : index
    %c0_31 = arith.constant 0 : index
    %25 = vector.load %arg3[%c0_30, %c0_31] : memref<1x128xf32, #tpu.memory_space<vmem>>, vector<1x128xf32>
    %26 = vector.broadcast %25 : vector<1x128xf32> to vector<16x128xf32>
    %27 = arith.mulf %24, %26 : vector<16x128xf32>
    %c0_32 = arith.constant 0 : index
    %c0_33 = arith.constant 0 : index
    %28 = vector.load %arg4[%c0_32, %c0_33] : memref<1x128xf32, #tpu.memory_space<vmem>>, vector<1x128xf32>
    %29 = vector.broadcast %28 : vector<1x128xf32> to vector<16x128xf32>
    %30 = arith.addf %27, %29 : vector<16x128xf32>
    %cst_34 = arith.constant 0.000000e+00 : f32
    %31 = vector.broadcast %cst_34 : f32 to vector<16x128xf32>
    %32 = arith.maximumf %30, %31 : vector<16x128xf32>
    %33 = arith.truncf %32 : vector<16x128xf32> to vector<16x128xbf16>
    %c1_35 = arith.constant 1 : index
    %c0_36 = arith.constant 0 : index
    %34 = vector.load %arg10[%c1_35, %c0_36] : memref<18x128xbf16, #tpu.memory_space<vmem>>, vector<16x128xbf16>
    tpu.vector_store %arg10[%c1_35, %c0_36], %33 {strides = array<i32>} : memref<18x128xbf16, #tpu.memory_space<vmem>>, vector<16x128xbf16>,
    %c0_37 = arith.constant 0 : index
    %c0_38 = arith.constant 0 : index
    %35 = vector.load %arg10[%c0_37, %c0_38] : memref<18x128xbf16, #tpu.memory_space<vmem>>, vector<16x128xbf16>
    %c0_39 = arith.constant 0 : index
    %c0_40 = arith.constant 0 : index
    %c0_41 = arith.constant 0 : index
    %36 = vector.load %arg5[%c0_39, %c0_40, %c0_41] : memref<3x128x128xbf16, #tpu.memory_space<vmem>>, vector<1x128x128xbf16>
    %37 = vector.shape_cast %36 : vector<1x128x128xbf16> to vector<128x128xbf16>
    %cst_42 = arith.constant dense<0.000000e+00> : vector<16x128xf32>
    %38 = tpu.matmul %35, %37, %cst_42 {dimension_numbers = #tpu.dot_dimension_numbers<[1], [0], [0], [1], [0, 0, 1, 1], [], []>} : vector<16x128xbf16>, vector<128x128xbf16>, vector<16x128xf32> -> vector<16x128xf32>
    %c1_43 = arith.constant 1 : index
    %c0_44 = arith.constant 0 : index
    %39 = vector.load %arg10[%c1_43, %c0_44] : memref<18x128xbf16, #tpu.memory_space<vmem>>, vector<16x128xbf16>
    %c1_45 = arith.constant 1 : index
    %c0_46 = arith.constant 0 : index
    %c0_47 = arith.constant 0 : index
    %40 = vector.load %arg5[%c1_45, %c0_46, %c0_47] : memref<3x128x128xbf16, #tpu.memory_space<vmem>>, vector<1x128x128xbf16>
    %41 = vector.shape_cast %40 : vector<1x128x128xbf16> to vector<128x128xbf16>
    %cst_48 = arith.constant dense<0.000000e+00> : vector<16x128xf32>
    %42 = tpu.matmul %39, %41, %cst_48 {dimension_numbers = #tpu.dot_dimension_numbers<[1], [0], [0], [1], [0, 0, 1, 1], [], []>} : vector<16x128xbf16>, vector<128x128xbf16>, vector<16x128xf32> -> vector<16x128xf32>
    %43 = arith.addf %38, %42 : vector<16x128xf32>
    %c2_49 = arith.constant 2 : index
    %c0_50 = arith.constant 0 : index
    %44 = vector.load %arg10[%c2_49, %c0_50] : memref<18x128xbf16, #tpu.memory_space<vmem>>, vector<16x128xbf16>
    %c2_51 = arith.constant 2 : index
    %c0_52 = arith.constant 0 : index
    %c0_53 = arith.constant 0 : index
    %45 = vector.load %arg5[%c2_51, %c0_52, %c0_53] : memref<3x128x128xbf16, #tpu.memory_space<vmem>>, vector<1x128x128xbf16>
    %46 = vector.shape_cast %45 : vector<1x128x128xbf16> to vector<128x128xbf16>
    %cst_54 = arith.constant dense<0.000000e+00> : vector<16x128xf32>
    %47 = tpu.matmul %44, %46, %cst_54 {dimension_numbers = #tpu.dot_dimension_numbers<[1], [0], [0], [1], [0, 0, 1, 1], [], []>} : vector<16x128xbf16>, vector<128x128xbf16>, vector<16x128xf32> -> vector<16x128xf32>
    %48 = arith.addf %43, %47 : vector<16x128xf32>
    %c0_55 = arith.constant 0 : index
    %c0_56 = arith.constant 0 : index
    %49 = vector.load %arg6[%c0_55, %c0_56] : memref<1x128xf32, #tpu.memory_space<vmem>>, vector<1x128xf32>
    %50 = vector.broadcast %49 : vector<1x128xf32> to vector<16x128xf32>
    %51 = arith.mulf %48, %50 : vector<16x128xf32>
    %c0_57 = arith.constant 0 : index
    %c0_58 = arith.constant 0 : index
    %52 = vector.load %arg7[%c0_57, %c0_58] : memref<1x128xf32, #tpu.memory_space<vmem>>, vector<1x128xf32>
    %53 = vector.broadcast %52 : vector<1x128xf32> to vector<16x128xf32>
    %54 = arith.addf %51, %53 : vector<16x128xf32>
    %cst_59 = arith.constant 0.000000e+00 : f32
    %55 = vector.broadcast %cst_59 : f32 to vector<16x128xf32>
    %56 = arith.maximumf %54, %55 : vector<16x128xf32>
    %57 = arith.truncf %56 : vector<16x128xf32> to vector<16x128xbf16>
    %c0_60 = arith.constant 0 : index
    %c0_61 = arith.constant 0 : index
    %c0_62 = arith.constant 0 : index
    %58 = vector.load %arg8[%c0_60, %c0_61, %c0_62] : memref<1x16x128xbf16, #tpu.memory_space<vmem>>, vector<1x16x128xbf16>
    %59 = vector.shape_cast %58 : vector<1x16x128xbf16> to vector<16x128xbf16>
    %60 = vector.shape_cast %57 : vector<16x128xbf16> to vector<1x16x128xbf16>
    tpu.vector_store %arg8[%c0_60, %c0_61, %c0_62], %60 {strides = array<i32>} : memref<1x16x128xbf16, #tpu.memory_space<vmem>>, vector<1x16x128xbf16>,
    return
  }
  func.func @transform_0(%arg0: i32) -> (i32, i32, i32) {
    %c0_i32 = arith.constant 0 : i32
    %c0_i32_0 = arith.constant 0 : i32
    %c0_i32_1 = arith.constant 0 : i32
    return %arg0, %c0_i32, %c0_i32_0 : i32, i32, i32
  }
  func.func @transform_1(%arg0: i32) -> (i32, i32, i32) {
    %c0_i32 = arith.constant 0 : i32
    %c0_i32_0 = arith.constant 0 : i32
    %c0_i32_1 = arith.constant 0 : i32
    %c0_i32_2 = arith.constant 0 : i32
    return %c0_i32, %c0_i32_0, %c0_i32_1 : i32, i32, i32
  }
  func.func @transform_2(%arg0: i32) -> (i32, i32) {
    %c0_i32 = arith.constant 0 : i32
    %c0_i32_0 = arith.constant 0 : i32
    %c0_i32_1 = arith.constant 0 : i32
    return %c0_i32, %c0_i32_0 : i32, i32
  }
  func.func @transform_3(%arg0: i32) -> (i32, i32) {
    %c0_i32 = arith.constant 0 : i32
    %c0_i32_0 = arith.constant 0 : i32
    %c0_i32_1 = arith.constant 0 : i32
    return %c0_i32, %c0_i32_0 : i32, i32
  }
  func.func @transform_4(%arg0: i32) -> (i32, i32, i32) {
    %c0_i32 = arith.constant 0 : i32
    %c0_i32_0 = arith.constant 0 : i32
    %c0_i32_1 = arith.constant 0 : i32
    %c0_i32_2 = arith.constant 0 : i32
    return %c0_i32, %c0_i32_0, %c0_i32_1 : i32, i32, i32
  }
  func.func @transform_5(%arg0: i32) -> (i32, i32) {
    %c0_i32 = arith.constant 0 : i32
    %c0_i32_0 = arith.constant 0 : i32
    %c0_i32_1 = arith.constant 0 : i32
    return %c0_i32, %c0_i32_0 : i32, i32
  }
  func.func @transform_6(%arg0: i32) -> (i32, i32) {
    %c0_i32 = arith.constant 0 : i32
    %c0_i32_0 = arith.constant 0 : i32
    %c0_i32_1 = arith.constant 0 : i32
    return %c0_i32, %c0_i32_0 : i32, i32
  }
  func.func @transform_7(%arg0: i32) -> (i32, i32, i32) {
    %c0_i32 = arith.constant 0 : i32
    %c0_i32_0 = arith.constant 0 : i32
    %c0_i32_1 = arith.constant 0 : i32
    return %arg0, %c0_i32, %c0_i32_0 : i32, i32, i32
  }
}

</mosaic_0001>

<llo_original>
// kernel: tpu_custom_call.1
$region0: #{tpu_custom_call.1}
  #allocation0 [shape = 'u32[]', space=smem, size = 0x4, offset = 0x4, fixed_abs, tag = 'smem constant byte address 0x4 - core index']
  #allocation1 [shape = 'u32[144,128]{1,0:T(1,128)}', space=vmem, size = 0x12000, scoped, tag = 'internal scratch']
  #allocation2 [shape = 'bf16[18,64]{1,0:T(8,128)(2,1)}', space=vmem, size = 0x1800, scoped, tag = 'scratch operand']
  #allocation3 [shape = 'bf16[18,128]{1,0:T(8,128)(2,1)}', space=vmem, size = 0x1800, scoped, tag = 'scratch operand']
  %s0 = inlined_call_operand.hbm [shape: bf16[2,16,64], index: 0, kind: input, shape index: {}]
  %s1 = inlined_call_operand.hbm [shape: bf16[3,64,128], index: 1, kind: input, shape index: {}]
  %s2 = inlined_call_operand.vmem [shape: f32[1,128], index: 2, kind: input, shape index: {}]
  %s3 = inlined_call_operand.vmem [shape: f32[1,128], index: 3, kind: input, shape index: {}]
  %s4 = inlined_call_operand.hbm [shape: bf16[3,128,128], index: 4, kind: input, shape index: {}]
  %s5 = inlined_call_operand.vmem [shape: f32[1,128], index: 5, kind: input, shape index: {}]
  %s6 = inlined_call_operand.vmem [shape: f32[1,128], index: 6, kind: input, shape index: {}]
  %s7 = inlined_call_operand.hbm [shape: bf16[2,16,128], index: 7, kind: output, shape index: {}]
  %s8 = sld [smem:[#allocation0]]
  $region73: #{tpu_custom_call.1} parent=0
    _
  %s10 = ssub.s32 1, %s8
  %s11 = scalar_select 0, %s10, %s8
  $region1: #{tpu_custom_call.1} parent=0
    #allocation4 [shape = 'u8[8192]{0}', space=vmem, size = 0x2000, scoped, tag = 'input window, operand 0']
    #allocation5 [shape = 's32[2]{0}', space=sflag, size = 0x8, scoped, tag = 'scoped memory for tpu_custom_call.1']
    #allocation6 [shape = 's32[2]{0}', space=sflag, size = 0x8, scoped, tag = 'scoped memory for tpu_custom_call.1']
    #allocation7 [shape = 'u8[49152]{0}', space=vmem, size = 0xc000, scoped, tag = 'input window, operand 1, single buffered']
    #allocation8 [shape = 's32[1]{0}', space=sflag, size = 0x4, scoped, tag = 'scoped memory for tpu_custom_call.1']
    #allocation9 [shape = 'u8[98304]{0}', space=vmem, size = 0x18000, scoped, tag = 'input window, operand 4, single buffered']
    #allocation10 [shape = 'u8[8192]{0}', space=vmem, size = 0x2000, scoped, tag = 'output window, operand 0']
    %12 = vsyncpa [#allocation5], 0
    %s13 = scalar_lea.sflag [#allocation5], 1
    %14 = vsyncpa %s13, 0
    %15 = vsyncpa [#allocation8], 0
    %16 = vsyncpa [#allocation6], 0
    %s17 = scalar_lea.sflag [#allocation6], 1
    %18 = vsyncpa %s17, 0
    loop: start=0, step=1, limit=4
    $region2: #{tpu_custom_call.1} parent=1 // loop_pre_header
      _
    $region3: #{tpu_custom_call.1} parent=1 // loop_header
      %s20 = sphi 0, %s24
      %p21 = scmp.ge.s32.totalorder %s20, 4
      %s30 = sphi 0, %s32
      %s33 = sphi 0, %s30
      %s34 = sphi 0, %s33
      %s50 = sphi 0, %s34
      %s54 = sphi 0, %s54
      %s56 = sphi 0, %s54
      %s57 = sphi 0, %s56
      %s71 = sphi 0, %s57
      %s75 = sphi 0, %s75
      %s77 = sphi 0, %s75
      %s78 = sphi 0, %s77
      %s92 = sphi 0, %s78
      %s96 = sphi 0, %s96
      %s98 = sphi 0, %s96
      %s99 = sphi 0, %s98
      %s113 = sphi 0, %s99
      %s117 = sphi 0, %s117
      %s119 = sphi 0, %s117
      %s120 = sphi 0, %s119
      %s134 = sphi 0, %s120
      %s138 = sphi 0, %s138
      %s140 = sphi 0, %s138
      %s141 = sphi 0, %s140
      %s155 = sphi 0, %s141
      %s159 = sphi 0, %s159
      %s161 = sphi 0, %s159
      %s162 = sphi 0, %s161
      %s176 = sphi 0, %s162
      %s182 = sphi 0, %s184
      %s185 = sphi 0, %s182
      %s186 = sphi 0, %s185
      %s202 = sphi 0, %s186
    $region4: #{tpu_custom_call.1} parent=1 // loop_header_branch
      %23 = sbr.rel (%p21) target = $region8
    $region5: #{tpu_custom_call.1} parent=1 // loop_body
      %s25 = ssub.s32 %s20, 1
      %s26 = ssub.s32 %s20, 2
      %s27 = sadd.s32 %s20, 1
      %s28 = ssub.s32 %s20, %s27
      %p29 = scmp.eq.s32.totalorder %s28, 0
      %s31 = sadd.s32 %s30, 1
      %s32 = scalar_select %p29, %s30, %s31
      %p35 = pneg %p29
      %p36 = scmp.eq.s32.totalorder %s20, 1
      %p37 = por %p35, %p36
      %p38 = scmp.ne.s32.totalorder %s30, %s33
      %p39 = scmp.eq.s32.totalorder %s20, 0
      %p40 = por %p38, %p39
      %p41 = scmp.ne.s32.totalorder %s30, %s33
      %p42 = scmp.eq.s32.totalorder %s25, 1
      %p43 = por %p41, %p42
      %p44 = scmp.ne.s32.totalorder %s33, %s34
      %p45 = scmp.eq.s32.totalorder %s25, 0
      %p46 = por %p44, %p45
      %p47 = scmp.ne.s32.totalorder %s33, %s34
      %p48 = scmp.eq.s32.totalorder %s26, 1
      %p49 = por %p47, %p48
      %p51 = scmp.ne.s32.totalorder %s34, %s50
      %p52 = scmp.eq.s32.totalorder %s26, 0
      %p53 = por %p51, %p52
      %s55 = sadd.s32 %s54, 1
      %p58 = scmp.eq.s32.totalorder %s20, 1
      %p59 = scmp.ne.s32.totalorder %s54, %s56
      %p60 = scmp.eq.s32.totalorder %s20, 0
      %p61 = por %p59, %p60
      %p62 = scmp.ne.s32.totalorder %s54, %s56
      %p63 = scmp.eq.s32.totalorder %s25, 1
      %p64 = por %p62, %p63
      %p65 = scmp.ne.s32.totalorder %s56, %s57
      %p66 = scmp.eq.s32.totalorder %s25, 0
      %p67 = por %p65, %p66
      %p68 = scmp.ne.s32.totalorder %s56, %s57
      %p69 = scmp.eq.s32.totalorder %s26, 1
      %p70 = por %p68, %p69
      %p72 = scmp.ne.s32.totalorder %s57, %s71
      %p73 = scmp.eq.s32.totalorder %s26, 0
      %p74 = por %p72, %p73
      %s76 = sadd.s32 %s75, 1
      %p79 = scmp.eq.s32.totalorder %s20, 1
      %p80 = scmp.ne.s32.totalorder %s75, %s77
      %p81 = scmp.eq.s32.totalorder %s20, 0
      %p82 = por %p80, %p81
      %p83 = scmp.ne.s32.totalorder %s75, %s77
      %p84 = scmp.eq.s32.totalorder %s25, 1
      %p85 = por %p83, %p84
      %p86 = scmp.ne.s32.totalorder %s77, %s78
      %p87 = scmp.eq.s32.totalorder %s25, 0
      %p88 = por %p86, %p87
      %p89 = scmp.ne.s32.totalorder %s77, %s78
      %p90 = scmp.eq.s32.totalorder %s26, 1
      %p91 = por %p89, %p90
      %p93 = scmp.ne.s32.totalorder %s78, %s92
      %p94 = scmp.eq.s32.totalorder %s26, 0
      %p95 = por %p93, %p94
      %s97 = sadd.s32 %s96, 1
      %p100 = scmp.eq.s32.totalorder %s20, 1
      %p101 = scmp.ne.s32.totalorder %s96, %s98
      %p102 = scmp.eq.s32.totalorder %s20, 0
      %p103 = por %p101, %p102
      %p104 = scmp.ne.s32.totalorder %s96, %s98
      %p105 = scmp.eq.s32.totalorder %s25, 1
      %p106 = por %p104, %p105
      %p107 = scmp.ne.s32.totalorder %s98, %s99
      %p108 = scmp.eq.s32.totalorder %s25, 0
      %p109 = por %p107, %p108
      %p110 = scmp.ne.s32.totalorder %s98, %s99
      %p111 = scmp.eq.s32.totalorder %s26, 1
      %p112 = por %p110, %p111
      %p114 = scmp.ne.s32.totalorder %s99, %s113
      %p115 = scmp.eq.s32.totalorder %s26, 0
      %p116 = por %p114, %p115
      %s118 = sadd.s32 %s117, 1
      %p121 = scmp.eq.s32.totalorder %s20, 1
      %p122 = scmp.ne.s32.totalorder %s117, %s119
      %p123 = scmp.eq.s32.totalorder %s20, 0
      %p124 = por %p122, %p123
      %p125 = scmp.ne.s32.totalorder %s117, %s119
      %p126 = scmp.eq.s32.totalorder %s25, 1
      %p127 = por %p125, %p126
      %p128 = scmp.ne.s32.totalorder %s119, %s120
      %p129 = scmp.eq.s32.totalorder %s25, 0
      %p130 = por %p128, %p129
      %p131 = scmp.ne.s32.totalorder %s119, %s120
      %p132 = scmp.eq.s32.totalorder %s26, 1
      %p133 = por %p131, %p132
      %p135 = scmp.ne.s32.totalorder %s120, %s134
      %p136 = scmp.eq.s32.totalorder %s26, 0
      %p137 = por %p135, %p136
      %s139 = sadd.s32 %s138, 1
      %p142 = scmp.eq.s32.totalorder %s20, 1
      %p143 = scmp.ne.s32.totalorder %s138, %s140
      %p144 = scmp.eq.s32.totalorder %s20, 0
      %p145 = por %p143, %p144
      %p146 = scmp.ne.s32.totalorder %s138, %s140
      %p147 = scmp.eq.s32.totalorder %s25, 1
      %p148 = por %p146, %p147
      %p149 = scmp.ne.s32.totalorder %s140, %s141
      %p150 = scmp.eq.s32.totalorder %s25, 0
      %p151 = por %p149, %p150
      %p152 = scmp.ne.s32.totalorder %s140, %s141
      %p153 = scmp.eq.s32.totalorder %s26, 1
      %p154 = por %p152, %p153
      %p156 = scmp.ne.s32.totalorder %s141, %s155
      %p157 = scmp.eq.s32.totalorder %s26, 0
      %p158 = por %p156, %p157
      %s160 = sadd.s32 %s159, 1
      %p163 = scmp.eq.s32.totalorder %s20, 1
      %p164 = scmp.ne.s32.totalorder %s159, %s161
      %p165 = scmp.eq.s32.totalorder %s20, 0
      %p166 = por %p164, %p165
      %p167 = scmp.ne.s32.totalorder %s159, %s161
      %p168 = scmp.eq.s32.totalorder %s25, 1
      %p169 = por %p167, %p168
      %p170 = scmp.ne.s32.totalorder %s161, %s162
      %p171 = scmp.eq.s32.totalorder %s25, 0
      %p172 = por %p170, %p171
      %p173 = scmp.ne.s32.totalorder %s161, %s162
      %p174 = scmp.eq.s32.totalorder %s26, 1
      %p175 = por %p173, %p174
      %p177 = scmp.ne.s32.totalorder %s162, %s176
      %p178 = scmp.eq.s32.totalorder %s26, 0
      %p179 = por %p177, %p178
      %s180 = ssub.s32 %s20, %s27
      %p181 = scmp.eq.s32.totalorder %s180, 0
      %s183 = sadd.s32 %s182, 1
      %s184 = scalar_select %p181, %s182, %s183
      %p187 = pneg %p181
      %p188 = scmp.eq.s32.totalorder %s20, 1
      %p189 = por %p187, %p188
      %p190 = scmp.ne.s32.totalorder %s182, %s185
      %p191 = scmp.eq.s32.totalorder %s20, 0
      %p192 = por %p190, %p191
      %p193 = scmp.ne.s32.totalorder %s182, %s185
      %p194 = scmp.eq.s32.totalorder %s25, 1
      %p195 = por %p193, %p194
      %p196 = scmp.ne.s32.totalorder %s185, %s186
      %p197 = scmp.eq.s32.totalorder %s25, 0
      %p198 = por %p196, %p197
      %p199 = scmp.ne.s32.totalorder %s185, %s186
      %p200 = scmp.eq.s32.totalorder %s26, 1
      %p201 = por %p199, %p200
      %p203 = scmp.ne.s32.totalorder %s186, %s202
      %p204 = scmp.eq.s32.totalorder %s26, 0
      %p205 = por %p203, %p204
      %p206 = scmp.le.s32.totalorder 1, %s20
      %p207 = scmp.lt.s32.totalorder %s20, 3
      %p208 = pnand %p206, %p207
      %p209 = pneg %p208
      // Predicated region
      $region9: #{tpu_custom_call.1} parent=5 // pred_check
        _
      $region10: #{tpu_custom_call.1} parent=5 // pred_check_branch
        %211 = sbr.rel (%p208) target = $region12
      $region11: #{tpu_custom_call.1} parent=5 // pred_region
        %s212 = ssub.s32 %s20, 1
        // Predicated region
        $region13: #{tpu_custom_call.1} parent=11 // pred_check
          %p213 = pneg %p67
        $region14: #{tpu_custom_call.1} parent=11 // pred_check_branch
          %215 = sbr.rel (%p213) target = $region16
        $region15: #{tpu_custom_call.1} parent=11 // pred_region
          %s217 = ssub.s32 1536, 1536
          %218 = vsyncadd [#allocation8], %s217
          %s219 = sshll.u32 [#allocation7], 4
          %s220 = int_to_ptr.vmem [resolvable:$true] %s219
          %225 = dma.hbm_to_vmem [thread:$0]  %s1, 1536, %s220, [#allocation8], 64, 64, 4
        $region16: #{tpu_custom_call.1} parent=11 // pred_fallthru
          _
        // Predicated region
        $region17: #{tpu_custom_call.1} parent=11 // pred_check
          %p226 = pneg %p88
        $region18: #{tpu_custom_call.1} parent=11 // pred_check_branch
          %228 = sbr.rel (%p226) target = $region20
        $region19: #{tpu_custom_call.1} parent=11 // pred_region
          _
        $region20: #{tpu_custom_call.1} parent=11 // pred_fallthru
          _
        // Predicated region
        $region21: #{tpu_custom_call.1} parent=11 // pred_check
          %p229 = pneg %p109
        $region22: #{tpu_custom_call.1} parent=11 // pred_check_branch
          %231 = sbr.rel (%p229) target = $region24
        $region23: #{tpu_custom_call.1} parent=11 // pred_region
          _
        $region24: #{tpu_custom_call.1} parent=11 // pred_fallthru
          _
        // Predicated region
        $region25: #{tpu_custom_call.1} parent=11 // pred_check
          %p232 = pneg %p130
        $region26: #{tpu_custom_call.1} parent=11 // pred_check_branch
          %234 = sbr.rel (%p232) target = $region28
        $region27: #{tpu_custom_call.1} parent=11 // pred_region
          %s236 = ssub.s32 3072, 3072
          %237 = vsyncadd [#allocation8], %s236
          %s238 = sshll.u32 [#allocation9], 4
          %s239 = int_to_ptr.vmem [resolvable:$true] %s238
          %244 = dma.hbm_to_vmem [thread:$0]  %s4, 3072, %s239, [#allocation8], 64, 64, 4
        $region28: #{tpu_custom_call.1} parent=11 // pred_fallthru
          _
        // Predicated region
        $region29: #{tpu_custom_call.1} parent=11 // pred_check
          %p245 = pneg %p151
        $region30: #{tpu_custom_call.1} parent=11 // pred_check_branch
          %247 = sbr.rel (%p245) target = $region32
        $region31: #{tpu_custom_call.1} parent=11 // pred_region
          _
        $region32: #{tpu_custom_call.1} parent=11 // pred_fallthru
          _
        // Predicated region
        $region33: #{tpu_custom_call.1} parent=11 // pred_check
          %p248 = pneg %p172
        $region34: #{tpu_custom_call.1} parent=11 // pred_check_branch
          %250 = sbr.rel (%p248) target = $region36
        $region35: #{tpu_custom_call.1} parent=11 // pred_region
          _
        $region36: #{tpu_custom_call.1} parent=11 // pred_fallthru
          _
      $region12: #{tpu_custom_call.1} parent=5 // pred_fallthru
        _
      %p251 = scmp.lt.s32.totalorder %s20, 2
      // Predicated region
      $region37: #{tpu_custom_call.1} parent=5 // pred_check
        %p252 = pneg %p251
      $region38: #{tpu_custom_call.1} parent=5 // pred_check_branch
        %254 = sbr.rel (%p252) target = $region40
      $region39: #{tpu_custom_call.1} parent=5 // pred_region
        // Predicated region
        $region41: #{tpu_custom_call.1} parent=39 // pred_check
          %p255 = pneg %p40
        $region42: #{tpu_custom_call.1} parent=39 // pred_check_branch
          %257 = sbr.rel (%p255) target = $region44
        $region43: #{tpu_custom_call.1} parent=39 // pred_region
          %s258 = sand.u32 %s30, 1
          %s259 = scalar_lea.sflag [#allocation5], %s258
          %s260 = sand.u32 %s30, 1
          %s261 = smul.addr %s260, 8
          %s262 = scalar_lea.vmem [#allocation4], %s261
          %s264 = ssub.s32 128, 128
          %265 = vsyncadd %s259, %s264
          %s266 = smul.addr %s20, 2
          %s267 = smul.addr %s266, 64
          %s268 = scalar_lea.hbm %s0, %s267
          %s269 = sshll.u32 %s262, 4
          %s270 = int_to_ptr.vmem [resolvable:$true] %s269
          %275 = dma.hbm_to_vmem [thread:$0]  %s268, 128, %s270, %s259, 64, 64, 4
        $region44: #{tpu_custom_call.1} parent=39 // pred_fallthru
          _
      $region40: #{tpu_custom_call.1} parent=5 // pred_fallthru
        _
      %p276 = scmp.le.s32.totalorder 1, %s20
      %p277 = scmp.lt.s32.totalorder %s20, 3
      %p278 = pnand %p276, %p277
      %p279 = pneg %p278
      // Predicated region
      $region45: #{tpu_custom_call.1} parent=5 // pred_check
        _
      $region46: #{tpu_custom_call.1} parent=5 // pred_check_branch
        %281 = sbr.rel (%p278) target = $region48
      $region47: #{tpu_custom_call.1} parent=5 // pred_region
        %s282 = ssub.s32 %s20, 1
        %s283 = sand.u32 %s33, 1
        %s284 = scalar_lea.sflag [#allocation5], %s283
        %s285 = sand.u32 %s33, 1
        %s286 = smul.addr %s285, 8
        %s287 = scalar_lea.vmem [#allocation4], %s286
        // Predicated region
        $region49: #{tpu_custom_call.1} parent=47 // pred_check
          %p288 = pneg %p46
        $region50: #{tpu_custom_call.1} parent=47 // pred_check_branch
          %290 = sbr.rel (%p288) target = $region52
        $region51: #{tpu_custom_call.1} parent=47 // pred_region
          %291 = dma.done %s284, 128
        $region52: #{tpu_custom_call.1} parent=47 // pred_fallthru
          _
        // Predicated region
        $region53: #{tpu_custom_call.1} parent=47 // pred_check
          %p292 = pneg %p67
        $region54: #{tpu_custom_call.1} parent=47 // pred_check_branch
          %294 = sbr.rel (%p292) target = $region56
        $region55: #{tpu_custom_call.1} parent=47 // pred_region
          %295 = dma.done [#allocation8], 1536
        $region56: #{tpu_custom_call.1} parent=47 // pred_fallthru
          _
        // Predicated region
        $region57: #{tpu_custom_call.1} parent=47 // pred_check
          %p296 = pneg %p130
        $region58: #{tpu_custom_call.1} parent=47 // pred_check_branch
          %298 = sbr.rel (%p296) target = $region60
        $region59: #{tpu_custom_call.1} parent=47 // pred_region
          %299 = dma.done [#allocation8], 3072
        $region60: #{tpu_custom_call.1} parent=47 // pred_fallthru
          _
        %s300 = sand.u32 %s33, 1
        %s301 = scalar_lea.sflag [#allocation5], %s300
        %s302 = sand.u32 %s33, 1
        %s303 = smul.addr %s302, 8
        %s304 = scalar_lea.vmem [#allocation4], %s303
        %p305 = pneg %p46
        %p306 = pneg %p43
        %p307 = pneg %p67
        %p308 = pneg %p64
        %p309 = pneg %p88
        %p310 = pneg %p85
        %p311 = pneg %p109
        %p312 = pneg %p106
        %p313 = pneg %p130
        %p314 = pneg %p127
        %p315 = pneg %p151
        %p316 = pneg %p148
        %p317 = pneg %p172
        %p318 = pneg %p169
        %p319 = pneg %p198
        %p320 = pneg %p195
        %s321 = sand.u32 %s185, 1
        %s322 = scalar_lea.sflag [#allocation6], %s321
        %s323 = sand.u32 %s185, 1
        %s324 = smul.addr %s323, 8
        %s325 = scalar_lea.vmem [#allocation10], %s324
        %vm327 = vcmask 516096
        %vm328 = vsmask.f32 256
        %vm329 = vmand %vm327, %vm328
        %v330 = vld [vmem:[#allocation2] sm:$0x1]
        %v331 = vsel %vm329, 0, %v330
        %332 = vst [vmem:[#allocation2] sm:$0x1] %v331
        %vm333 = vsmask.f32 7938
        %vm334 = vmand %vm327, %vm333
        %v335 = vld [vmem:[#allocation2 + $0x8] sm:$0x1]
        %v336 = vsel %vm334, 0, %v335
        %337 = vst [vmem:[#allocation2 + $0x8] sm:$0x1] %v336
        %vm338 = vcmask 1040384
        %vm339 = vmand %vm338, %vm328
        %v340 = vld [vmem:[#allocation3] sm:$0x1]
        %v341 = vsel %vm339, 0, %v340
        %342 = vst [vmem:[#allocation3] sm:$0x1] %v341
        %vm343 = vmand %vm338, %vm333
        %v344 = vld [vmem:[#allocation3 + $0x8] sm:$0x1]
        %v345 = vsel %vm343, 0, %v344
        %346 = vst [vmem:[#allocation3 + $0x8] sm:$0x1] %v345
        %v347 = vld [vmem:[%s287] sm:$0xf]
        %v348 = vld [vmem:[%s287 + $0x4] sm:$0xf]
        %vm349 = vsmask.f32 4368
        %vm350 = vmor %vm328, %vm349
        %v352 = vshrl.u32 %v347, 16
        %v354 = vrot.slane %v352, 7
        %v355 = vshll.u32 %v347, 16
        %v357 = vor.u32 %v354, %v355
        %v358 = vrot.slane %v354, 4
        %v360 = vshrl.u32 %v348, 16
        %v362 = vrot.slane %v360, 7
        %v363 = vshll.u32 %v348, 16
        %v365 = vor.u32 %v362, %v363
        %v366 = vsel %vm350, %v358, %v365
        %v367 = vrot.slane %v362, 4
        %vm371 = vcmask 519168
        %vm372 = vmand %vm371, %vm333
        %v373 = vld [vmem:[#allocation2] sm:$0xf]
        %v374 = vsel %vm372, %v357, %v373
        %375 = vst [vmem:[#allocation2] sm:$0xf] %v374
        %vm376 = vcmask 519168
        %377 = vst.msk [vmem:[#allocation2 + $0x4] sm:$0xf] %vm376, %v366
        %v378 = vld [vmem:[#allocation2 + $0x8] sm:$0x1]
        %v379 = vsel %vm329, %v367, %v378
        %380 = vst [vmem:[#allocation2 + $0x8] sm:$0x1] %v379
        %v381 = vld [vmem:[#allocation2] sm:$0xf]
        %v382 = vld [vmem:[#allocation2 + $0x4] sm:$0xf]
        %v383 = vld [vmem:[#allocation7] sm:$0xf]
        %v384 = vld [vmem:[#allocation7 + $0x4] sm:$0xf]
        %v385 = vld [vmem:[#allocation7 + $0x8] sm:$0xf]
        %v386 = vld [vmem:[#allocation7 + $0xc] sm:$0xf]
        %v387 = vld [vmem:[#allocation7 + $0x10] sm:$0xf]
        %v388 = vld [vmem:[#allocation7 + $0x14] sm:$0xf]
        %v389 = vld [vmem:[#allocation7 + $0x18] sm:$0xf]
        %v390 = vld [vmem:[#allocation7 + $0x1c] sm:$0xf]
        %v391 = vld [vmem:[#allocation2 + $0x8] sm:$0x1]
        %s392 = scalar_lea.vmem [#allocation7], 32
        %v393 = vld [vmem:[%s392] sm:$0xf]
        %v394 = vld [vmem:[%s392 + $0x4] sm:$0xf]
        %v395 = vld [vmem:[%s392 + $0x8] sm:$0xf]
        %v396 = vld [vmem:[%s392 + $0xc] sm:$0xf]
        %v397 = vld [vmem:[%s392 + $0x10] sm:$0xf]
        %v398 = vld [vmem:[%s392 + $0x14] sm:$0xf]
        %v399 = vld [vmem:[%s392 + $0x18] sm:$0xf]
        %v400 = vld [vmem:[%s392 + $0x1c] sm:$0xf]
        %v404 = vunpack.c.l.b16 %v381
        %v405 = vunpack.c.l.b16 %v382
        %v406 = vunpack.c.l.b16 %v391
        %v407 = vpack.c.b16 %v405, %v404
        %v408 = vpack.c.b16 %v406, %v406
        %vm409 = vsmask.f32 7424
        %v411 = vshrl.u32 %v407, 16
        %v413 = vshll.u32 %v407, 16
        %v415 = vrot.slane %v413, 1
        %v416 = vor.u32 %v411, %v415
        %v418 = vshll.u32 %v408, 16
        %v420 = vrot.slane %v418, 1
        %v421 = vsel %vm409, %v416, %v420
        %v430 = vunpack.c.l.b16 %v393
        %v431 = vunpack.c.l.b16 %v394
        %v432 = vunpack.c.l.b16 %v395
        %v433 = vunpack.c.l.b16 %v396
        %v434 = vunpack.c.l.b16 %v397
        %v435 = vunpack.c.l.b16 %v398
        %v436 = vunpack.c.l.b16 %v399
        %v437 = vunpack.c.l.b16 %v400
        %v438 = vpack.c.b16 %v431, %v430
        %v439 = vpack.c.b16 %v433, %v432
        %v440 = vpack.c.b16 %v435, %v434
        %v441 = vpack.c.b16 %v437, %v436
        %vm446 = vcmask 523264
        %v448 = vsel %vm446, %v421, 0
        %450 = vmatprep.subr.bf16.mxu0 0
        %451 = vmatpush1.bf16.msra.mxu0 0
        %452 = vmatprep.subr.bf16.mxu0 0
        %453 = vmatpush1.bf16.msra.mxu0 0
        %454 = vmatprep.subr.bf16.mxu0 0
        %455 = vmatpush1.bf16.msra.mxu0 0
        %456 = vmatprep.subr.bf16.mxu0 0
        %457 = vmatpush1.bf16.msra.mxu0 0
        %458 = vmatprep.subr.bf16.mxu0 0
        %459 = vmatpush1.bf16.msra.mxu0 %v441
        %460 = vmatprep.subr.bf16.mxu0 0
        %461 = vmatpush1.bf16.msra.mxu0 %v440
        %462 = vmatprep.subr.bf16.mxu0 0
        %463 = vmatpush1.bf16.msra.mxu0 %v439
        %464 = vmatprep.subr.bf16.mxu0 0
        %465 = vmatpush1.bf16.msra.mxu0 %v438
        %466 = vmatprep.subr.bf16.mxu0 0
        %467 = vmatpush2.bf16.msra.mxu0 0
        %468 = vmatprep.subr.bf16.mxu0 0
        %469 = vmatpush2.bf16.msra.mxu0 0
        %470 = vmatprep.subr.bf16.mxu0 0
        %471 = vmatpush2.bf16.msra.mxu0 0
        %472 = vmatprep.subr.bf16.mxu0 0
        %473 = vmatpush2.bf16.msra.mxu0 0
        %474 = vmatprep.subr.bf16.mxu0 0
        %475 = vmatpush2.bf16.msra.mxu0 0
        %476 = vmatprep.subr.bf16.mxu0 0
        %477 = vmatpush2.bf16.msra.mxu0 0
        %478 = vmatprep.subr.bf16.mxu0 0
        %479 = vmatpush2.bf16.msra.mxu0 0
        %480 = vmatprep.subr.bf16.mxu0 0
        %481 = vmatpush2.bf16.msra.mxu0 0
        %482 = vmatprep.mubr.bf16.mxu0 0
        %483 = vmatmul.mubr.bf16.gmra.mxu0 %v448
        %v484 = vpop.f32.mrf.mxu0
        %v485 = vadd.f32 0.0, %v484
        %v486 = vpop.f32.mrf.mxu0
        %v487 = vpop.f32.mrf.mxu0
        %v488 = vadd.f32 0.0, %v487
        %v489 = vpop.f32.mrf.mxu0
        %490 = vdwg.mxu0
        %v499 = vunpack.c.l.b16 %v383
        %v500 = vunpack.c.l.b16 %v384
        %v501 = vunpack.c.l.b16 %v385
        %v502 = vunpack.c.l.b16 %v386
        %v503 = vunpack.c.l.b16 %v387
        %v504 = vunpack.c.l.b16 %v388
        %v505 = vunpack.c.l.b16 %v389
        %v506 = vunpack.c.l.b16 %v390
        %v507 = vpack.c.b16 %v500, %v499
        %v508 = vpack.c.b16 %v502, %v501
        %v509 = vpack.c.b16 %v504, %v503
        %v510 = vpack.c.b16 %v506, %v505
        %v515 = vsel %vm446, %v407, 0
        %517 = vmatprep.subr.bf16.mxu0 0
        %518 = vmatpush1.bf16.msra.mxu0 0
        %519 = vmatprep.subr.bf16.mxu0 0
        %520 = vmatpush1.bf16.msra.mxu0 0
        %521 = vmatprep.subr.bf16.mxu0 0
        %522 = vmatpush1.bf16.msra.mxu0 0
        %523 = vmatprep.subr.bf16.mxu0 0
        %524 = vmatpush1.bf16.msra.mxu0 0
        %525 = vmatprep.subr.bf16.mxu0 0
        %526 = vmatpush1.bf16.msra.mxu0 %v510
        %527 = vmatprep.subr.bf16.mxu0 0
        %528 = vmatpush1.bf16.msra.mxu0 %v509
        %529 = vmatprep.subr.bf16.mxu0 0
        %530 = vmatpush1.bf16.msra.mxu0 %v508
        %531 = vmatprep.subr.bf16.mxu0 0
        %532 = vmatpush1.bf16.msra.mxu0 %v507
        %533 = vmatprep.subr.bf16.mxu0 0
        %534 = vmatpush2.bf16.msra.mxu0 0
        %535 = vmatprep.subr.bf16.mxu0 0
        %536 = vmatpush2.bf16.msra.mxu0 0
        %537 = vmatprep.subr.bf16.mxu0 0
        %538 = vmatpush2.bf16.msra.mxu0 0
        %539 = vmatprep.subr.bf16.mxu0 0
        %540 = vmatpush2.bf16.msra.mxu0 0
        %541 = vmatprep.subr.bf16.mxu0 0
        %542 = vmatpush2.bf16.msra.mxu0 0
        %543 = vmatprep.subr.bf16.mxu0 0
        %544 = vmatpush2.bf16.msra.mxu0 0
        %545 = vmatprep.subr.bf16.mxu0 0
        %546 = vmatpush2.bf16.msra.mxu0 0
        %547 = vmatprep.subr.bf16.mxu0 0
        %548 = vmatpush2.bf16.msra.mxu0 0
        %549 = vmatprep.mubr.bf16.mxu0 0
        %550 = vmatmul.mubr.bf16.gmra.mxu0 %v515
        %v551 = vpop.f32.mrf.mxu0
        %v552 = vadd.f32 %v485, %v551
        %v553 = vpop.f32.mrf.mxu0
        %v554 = vpop.f32.mrf.mxu0
        %v555 = vadd.f32 %v488, %v554
        %v556 = vpop.f32.mrf.mxu0
        %557 = vdwg.mxu0
        %v558 = vld [vmem:[#allocation2] sm:$0xe]
        %s559 = scalar_lea.vmem [#allocation7], 64
        %v560 = vld [vmem:[%s559] sm:$0xf]
        %v561 = vld [vmem:[%s559 + $0x4] sm:$0xf]
        %v562 = vld [vmem:[%s559 + $0x8] sm:$0xf]
        %v563 = vld [vmem:[%s559 + $0xc] sm:$0xf]
        %v564 = vld [vmem:[%s559 + $0x10] sm:$0xf]
        %v565 = vld [vmem:[%s559 + $0x14] sm:$0xf]
        %v566 = vld [vmem:[%s559 + $0x18] sm:$0xf]
        %v567 = vld [vmem:[%s559 + $0x1c] sm:$0xf]
        %v569 = vunpack.c.l.b16 %v558
        %v570 = vpack.c.b16 %v405, %v569
        %vm571 = vcmask 1046528
        %v572 = vrot.slane %v570, 1
        %v573 = vrot.slane %v408, 1
        %v574 = vsel %vm571, %v572, %v573
        %v583 = vunpack.c.l.b16 %v560
        %v584 = vunpack.c.l.b16 %v561
        %v585 = vunpack.c.l.b16 %v562
        %v586 = vunpack.c.l.b16 %v563
        %v587 = vunpack.c.l.b16 %v564
        %v588 = vunpack.c.l.b16 %v565
        %v589 = vunpack.c.l.b16 %v566
        %v590 = vunpack.c.l.b16 %v567
        %v591 = vpack.c.b16 %v584, %v583
        %v592 = vpack.c.b16 %v586, %v585
        %v593 = vpack.c.b16 %v588, %v587
        %v594 = vpack.c.b16 %v590, %v589
        %v600 = vsel %vm446, %v574, 0
        %602 = vmatprep.subr.bf16.mxu0 0
        %603 = vmatpush1.bf16.msra.mxu0 0
        %604 = vmatprep.subr.bf16.mxu0 0
        %605 = vmatpush1.bf16.msra.mxu0 0
        %606 = vmatprep.subr.bf16.mxu0 0
        %607 = vmatpush1.bf16.msra.mxu0 0
        %608 = vmatprep.subr.bf16.mxu0 0
        %609 = vmatpush1.bf16.msra.mxu0 0
        %610 = vmatprep.subr.bf16.mxu0 0
        %611 = vmatpush1.bf16.msra.mxu0 %v594
        %612 = vmatprep.subr.bf16.mxu0 0
        %613 = vmatpush1.bf16.msra.mxu0 %v593
        %614 = vmatprep.subr.bf16.mxu0 0
        %615 = vmatpush1.bf16.msra.mxu0 %v592
        %616 = vmatprep.subr.bf16.mxu0 0
        %617 = vmatpush1.bf16.msra.mxu0 %v591
        %618 = vmatprep.subr.bf16.mxu0 0
        %619 = vmatpush2.bf16.msra.mxu0 0
        %620 = vmatprep.subr.bf16.mxu0 0
        %621 = vmatpush2.bf16.msra.mxu0 0
        %622 = vmatprep.subr.bf16.mxu0 0
        %623 = vmatpush2.bf16.msra.mxu0 0
        %624 = vmatprep.subr.bf16.mxu0 0
        %625 = vmatpush2.bf16.msra.mxu0 0
        %626 = vmatprep.subr.bf16.mxu0 0
        %627 = vmatpush2.bf16.msra.mxu0 0
        %628 = vmatprep.subr.bf16.mxu0 0
        %629 = vmatpush2.bf16.msra.mxu0 0
        %630 = vmatprep.subr.bf16.mxu0 0
        %631 = vmatpush2.bf16.msra.mxu0 0
        %632 = vmatprep.subr.bf16.mxu0 0
        %633 = vmatpush2.bf16.msra.mxu0 0
        %634 = vmatprep.mubr.bf16.mxu0 0
        %635 = vmatmul.mubr.bf16.gmra.mxu0 %v600
        %v636 = vpop.f32.mrf.mxu0
        %v637 = vadd.f32 0.0, %v636
        %v638 = vpop.f32.mrf.mxu0
        %v639 = vpop.f32.mrf.mxu0
        %v640 = vadd.f32 0.0, %v639
        %v641 = vpop.f32.mrf.mxu0
        %642 = vdwg.mxu0
        %v643 = vadd.f32 %v552, %v637
        %v644 = vadd.f32 %v555, %v640
        %v645 = vld [vmem:[%s2] sm:$0x1]
        %v647 = vlaneseq
        %v648 = vshrl.u32 %v647, 7
        %v649 = vsub.s32 0, %v648
        %v650 = vrot.slane %v645, %v649
        %v652 = vmul.f32 %v643, %v650
        %v653 = vmul.f32 %v644, %v650
        %v654 = vld [vmem:[%s3] sm:$0x1]
        %v656 = vlaneseq
        %v657 = vshrl.u32 %v656, 7
        %v658 = vsub.s32 0, %v657
        %v659 = vrot.slane %v654, %v658
        %v661 = vadd.f32 %v652, %v659
        %v662 = vadd.f32 %v653, %v659
        %v663 = vmax.f32 %v661, 0.0
        %v664 = vmax.f32 %v662, 0.0
        %v665 = vpack.c.bf16 %v664, %v663
        %v667 = vunpack.c.l.b16 %v665
        %v668 = vunpack.c.h.b16 %v665
        %v669 = vpack.c.b16 %v667, %v667
        %v670 = vpack.c.b16 %v668, %v668
        %v672 = vshrl.u32 %v669, 16
        %v674 = vrot.slane %v672, 7
        %v675 = vshll.u32 %v669, 16
        %v677 = vor.u32 %v674, %v675
        %v678 = vrot.slane %v674, 4
        %v680 = vshrl.u32 %v670, 16
        %v682 = vrot.slane %v680, 7
        %v683 = vshll.u32 %v670, 16
        %v685 = vor.u32 %v682, %v683
        %v686 = vsel %vm350, %v678, %v685
        %v687 = vrot.slane %v682, 4
        %vm691 = vcmask 1043456
        %vm692 = vmand %vm691, %vm333
        %v693 = vld [vmem:[#allocation3] sm:$0xf]
        %v694 = vsel %vm692, %v677, %v693
        %695 = vst [vmem:[#allocation3] sm:$0xf] %v694
        %696 = vst [vmem:[#allocation3 + $0x4] sm:$0xf] %v686
        %v697 = vld [vmem:[#allocation3 + $0x8] sm:$0x1]
        %v698 = vsel %vm339, %v687, %v697
        %699 = vst [vmem:[#allocation3 + $0x8] sm:$0x1] %v698
        %v700 = vld [vmem:[#allocation3] sm:$0xf]
        %v701 = vld [vmem:[#allocation3 + $0x4] sm:$0xf]
        %v702 = vld [vmem:[#allocation9] sm:$0xf]
        %v703 = vld [vmem:[#allocation9 + $0x4] sm:$0xf]
        %v704 = vld [vmem:[#allocation9 + $0x8] sm:$0xf]
        %v705 = vld [vmem:[#allocation9 + $0xc] sm:$0xf]
        %v706 = vld [vmem:[#allocation9 + $0x10] sm:$0xf]
        %v707 = vld [vmem:[#allocation9 + $0x14] sm:$0xf]
        %v708 = vld [vmem:[#allocation9 + $0x18] sm:$0xf]
        %v709 = vld [vmem:[#allocation9 + $0x1c] sm:$0xf]
        %v710 = vld [vmem:[#allocation9 + $0x20] sm:$0xf]
        %v711 = vld [vmem:[#allocation9 + $0x24] sm:$0xf]
        %v712 = vld [vmem:[#allocation9 + $0x28] sm:$0xf]
        %v713 = vld [vmem:[#allocation9 + $0x2c] sm:$0xf]
        %v714 = vld [vmem:[#allocation9 + $0x30] sm:$0xf]
        %v715 = vld [vmem:[#allocation9 + $0x34] sm:$0xf]
        %v716 = vld [vmem:[#allocation9 + $0x38] sm:$0xf]
        %v717 = vld [vmem:[#allocation9 + $0x3c] sm:$0xf]
        %v718 = vld [vmem:[#allocation3 + $0x8] sm:$0x1]
        %s719 = scalar_lea.vmem [#allocation9], 64
        %v720 = vld [vmem:[%s719] sm:$0xf]
        %v721 = vld [vmem:[%s719 + $0x4] sm:$0xf]
        %v722 = vld [vmem:[%s719 + $0x8] sm:$0xf]
        %v723 = vld [vmem:[%s719 + $0xc] sm:$0xf]
        %v724 = vld [vmem:[%s719 + $0x10] sm:$0xf]
        %v725 = vld [vmem:[%s719 + $0x14] sm:$0xf]
        %v726 = vld [vmem:[%s719 + $0x18] sm:$0xf]
        %v727 = vld [vmem:[%s719 + $0x1c] sm:$0xf]
        %v728 = vld [vmem:[%s719 + $0x20] sm:$0xf]
        %v729 = vld [vmem:[%s719 + $0x24] sm:$0xf]
        %v730 = vld [vmem:[%s719 + $0x28] sm:$0xf]
        %v731 = vld [vmem:[%s719 + $0x2c] sm:$0xf]
        %v732 = vld [vmem:[%s719 + $0x30] sm:$0xf]
        %v733 = vld [vmem:[%s719 + $0x34] sm:$0xf]
        %v734 = vld [vmem:[%s719 + $0x38] sm:$0xf]
        %v735 = vld [vmem:[%s719 + $0x3c] sm:$0xf]
        %v739 = vunpack.c.l.b16 %v700
        %v740 = vunpack.c.l.b16 %v701
        %v741 = vunpack.c.l.b16 %v718
        %v742 = vpack.c.b16 %v740, %v739
        %v743 = vpack.c.b16 %v741, %v741
        %v745 = vshrl.u32 %v742, 16
        %v747 = vshll.u32 %v742, 16
        %v749 = vrot.slane %v747, 1
        %v750 = vor.u32 %v745, %v749
        %v752 = vshll.u32 %v743, 16
        %v754 = vrot.slane %v752, 1
        %v755 = vsel %vm409, %v750, %v754
        %v773 = vunpack.c.l.b16 %v720
        %v774 = vunpack.c.l.b16 %v721
        %v775 = vunpack.c.l.b16 %v722
        %v776 = vunpack.c.l.b16 %v723
        %v777 = vunpack.c.l.b16 %v724
        %v778 = vunpack.c.l.b16 %v725
        %v779 = vunpack.c.l.b16 %v726
        %v780 = vunpack.c.l.b16 %v727
        %v781 = vunpack.c.l.b16 %v728
        %v782 = vunpack.c.l.b16 %v729
        %v783 = vunpack.c.l.b16 %v730
        %v784 = vunpack.c.l.b16 %v731
        %v785 = vunpack.c.l.b16 %v732
        %v786 = vunpack.c.l.b16 %v733
        %v787 = vunpack.c.l.b16 %v734
        %v788 = vunpack.c.l.b16 %v735
        %v789 = vpack.c.b16 %v774, %v773
        %v790 = vpack.c.b16 %v776, %v775
        %v791 = vpack.c.b16 %v778, %v777
        %v792 = vpack.c.b16 %v780, %v779
        %v793 = vpack.c.b16 %v782, %v781
        %v794 = vpack.c.b16 %v784, %v783
        %v795 = vpack.c.b16 %v786, %v785
        %v796 = vpack.c.b16 %v788, %v787
        %805 = vmatprep.subr.bf16.mxu0 0
        %806 = vmatpush1.bf16.msra.mxu0 %v796
        %807 = vmatprep.subr.bf16.mxu0 0
        %808 = vmatpush1.bf16.msra.mxu0 %v795
        %809 = vmatprep.subr.bf16.mxu0 0
        %810 = vmatpush1.bf16.msra.mxu0 %v794
        %811 = vmatprep.subr.bf16.mxu0 0
        %812 = vmatpush1.bf16.msra.mxu0 %v793
        %813 = vmatprep.subr.bf16.mxu0 0
        %814 = vmatpush1.bf16.msra.mxu0 %v792
        %815 = vmatprep.subr.bf16.mxu0 0
        %816 = vmatpush1.bf16.msra.mxu0 %v791
        %817 = vmatprep.subr.bf16.mxu0 0
        %818 = vmatpush1.bf16.msra.mxu0 %v790
        %819 = vmatprep.subr.bf16.mxu0 0
        %820 = vmatpush1.bf16.msra.mxu0 %v789
        %821 = vmatprep.subr.bf16.mxu0 0
        %822 = vmatpush2.bf16.msra.mxu0 0
        %823 = vmatprep.subr.bf16.mxu0 0
        %824 = vmatpush2.bf16.msra.mxu0 0
        %825 = vmatprep.subr.bf16.mxu0 0
        %826 = vmatpush2.bf16.msra.mxu0 0
        %827 = vmatprep.subr.bf16.mxu0 0
        %828 = vmatpush2.bf16.msra.mxu0 0
        %829 = vmatprep.subr.bf16.mxu0 0
        %830 = vmatpush2.bf16.msra.mxu0 0
        %831 = vmatprep.subr.bf16.mxu0 0
        %832 = vmatpush2.bf16.msra.mxu0 0
        %833 = vmatprep.subr.bf16.mxu0 0
        %834 = vmatpush2.bf16.msra.mxu0 0
        %835 = vmatprep.subr.bf16.mxu0 0
        %836 = vmatpush2.bf16.msra.mxu0 0
        %837 = vmatprep.mubr.bf16.mxu0 0
        %838 = vmatmul.mubr.bf16.gmra.mxu0 %v755
        %v839 = vpop.f32.mrf.mxu0
        %v840 = vadd.f32 0.0, %v839
        %v841 = vpop.f32.mrf.mxu0
        %v842 = vpop.f32.mrf.mxu0
        %v843 = vadd.f32 0.0, %v842
        %v844 = vpop.f32.mrf.mxu0
        %845 = vdwg.mxu0
        %v863 = vunpack.c.l.b16 %v702
        %v864 = vunpack.c.l.b16 %v703
        %v865 = vunpack.c.l.b16 %v704
        %v866 = vunpack.c.l.b16 %v705
        %v867 = vunpack.c.l.b16 %v706
        %v868 = vunpack.c.l.b16 %v707
        %v869 = vunpack.c.l.b16 %v708
        %v870 = vunpack.c.l.b16 %v709
        %v871 = vunpack.c.l.b16 %v710
        %v872 = vunpack.c.l.b16 %v711
        %v873 = vunpack.c.l.b16 %v712
        %v874 = vunpack.c.l.b16 %v713
        %v875 = vunpack.c.l.b16 %v714
        %v876 = vunpack.c.l.b16 %v715
        %v877 = vunpack.c.l.b16 %v716
        %v878 = vunpack.c.l.b16 %v717
        %v879 = vpack.c.b16 %v864, %v863
        %v880 = vpack.c.b16 %v866, %v865
        %v881 = vpack.c.b16 %v868, %v867
        %v882 = vpack.c.b16 %v870, %v869
        %v883 = vpack.c.b16 %v872, %v871
        %v884 = vpack.c.b16 %v874, %v873
        %v885 = vpack.c.b16 %v876, %v875
        %v886 = vpack.c.b16 %v878, %v877
        %895 = vmatprep.subr.bf16.mxu0 0
        %896 = vmatpush1.bf16.msra.mxu0 %v886
        %897 = vmatprep.subr.bf16.mxu0 0
        %898 = vmatpush1.bf16.msra.mxu0 %v885
        %899 = vmatprep.subr.bf16.mxu0 0
        %900 = vmatpush1.bf16.msra.mxu0 %v884
        %901 = vmatprep.subr.bf16.mxu0 0
        %902 = vmatpush1.bf16.msra.mxu0 %v883
        %903 = vmatprep.subr.bf16.mxu0 0
        %904 = vmatpush1.bf16.msra.mxu0 %v882
        %905 = vmatprep.subr.bf16.mxu0 0
        %906 = vmatpush1.bf16.msra.mxu0 %v881
        %907 = vmatprep.subr.bf16.mxu0 0
        %908 = vmatpush1.bf16.msra.mxu0 %v880
        %909 = vmatprep.subr.bf16.mxu0 0
        %910 = vmatpush1.bf16.msra.mxu0 %v879
        %911 = vmatprep.subr.bf16.mxu0 0
        %912 = vmatpush2.bf16.msra.mxu0 0
        %913 = vmatprep.subr.bf16.mxu0 0
        %914 = vmatpush2.bf16.msra.mxu0 0
        %915 = vmatprep.subr.bf16.mxu0 0
        %916 = vmatpush2.bf16.msra.mxu0 0
        %917 = vmatprep.subr.bf16.mxu0 0
        %918 = vmatpush2.bf16.msra.mxu0 0
        %919 = vmatprep.subr.bf16.mxu0 0
        %920 = vmatpush2.bf16.msra.mxu0 0
        %921 = vmatprep.subr.bf16.mxu0 0
        %922 = vmatpush2.bf16.msra.mxu0 0
        %923 = vmatprep.subr.bf16.mxu0 0
        %924 = vmatpush2.bf16.msra.mxu0 0
        %925 = vmatprep.subr.bf16.mxu0 0
        %926 = vmatpush2.bf16.msra.mxu0 0
        %927 = vmatprep.mubr.bf16.mxu0 0
        %928 = vmatmul.mubr.bf16.gmra.mxu0 %v742
        %v929 = vpop.f32.mrf.mxu0
        %v930 = vadd.f32 %v840, %v929
        %v931 = vpop.f32.mrf.mxu0
        %v932 = vpop.f32.mrf.mxu0
        %v933 = vadd.f32 %v843, %v932
        %v934 = vpop.f32.mrf.mxu0
        %935 = vdwg.mxu0
        %v936 = vld [vmem:[#allocation3] sm:$0xe]
        %s937 = scalar_lea.vmem [#allocation9], 128
        %v938 = vld [vmem:[%s937] sm:$0xf]
        %v939 = vld [vmem:[%s937 + $0x4] sm:$0xf]
        %v940 = vld [vmem:[%s937 + $0x8] sm:$0xf]
        %v941 = vld [vmem:[%s937 + $0xc] sm:$0xf]
        %v942 = vld [vmem:[%s937 + $0x10] sm:$0xf]
        %v943 = vld [vmem:[%s937 + $0x14] sm:$0xf]
        %v944 = vld [vmem:[%s937 + $0x18] sm:$0xf]
        %v945 = vld [vmem:[%s937 + $0x1c] sm:$0xf]
        %v946 = vld [vmem:[%s937 + $0x20] sm:$0xf]
        %v947 = vld [vmem:[%s937 + $0x24] sm:$0xf]
        %v948 = vld [vmem:[%s937 + $0x28] sm:$0xf]
        %v949 = vld [vmem:[%s937 + $0x2c] sm:$0xf]
        %v950 = vld [vmem:[%s937 + $0x30] sm:$0xf]
        %v951 = vld [vmem:[%s937 + $0x34] sm:$0xf]
        %v952 = vld [vmem:[%s937 + $0x38] sm:$0xf]
        %v953 = vld [vmem:[%s937 + $0x3c] sm:$0xf]
        %v955 = vunpack.c.l.b16 %v936
        %v956 = vpack.c.b16 %v740, %v955
        %v957 = vrot.slane %v956, 1
        %v958 = vrot.slane %v743, 1
        %v959 = vsel %vm571, %v957, %v958
        %v977 = vunpack.c.l.b16 %v938
        %v978 = vunpack.c.l.b16 %v939
        %v979 = vunpack.c.l.b16 %v940
        %v980 = vunpack.c.l.b16 %v941
        %v981 = vunpack.c.l.b16 %v942
        %v982 = vunpack.c.l.b16 %v943
        %v983 = vunpack.c.l.b16 %v944
        %v984 = vunpack.c.l.b16 %v945
        %v985 = vunpack.c.l.b16 %v946
        %v986 = vunpack.c.l.b16 %v947
        %v987 = vunpack.c.l.b16 %v948
        %v988 = vunpack.c.l.b16 %v949
        %v989 = vunpack.c.l.b16 %v950
        %v990 = vunpack.c.l.b16 %v951
        %v991 = vunpack.c.l.b16 %v952
        %v992 = vunpack.c.l.b16 %v953
        %v993 = vpack.c.b16 %v978, %v977
        %v994 = vpack.c.b16 %v980, %v979
        %v995 = vpack.c.b16 %v982, %v981
        %v996 = vpack.c.b16 %v984, %v983
        %v997 = vpack.c.b16 %v986, %v985
        %v998 = vpack.c.b16 %v988, %v987
        %v999 = vpack.c.b16 %v990, %v989
        %v1000 = vpack.c.b16 %v992, %v991
        %1009 = vmatprep.subr.bf16.mxu0 0
        %1010 = vmatpush1.bf16.msra.mxu0 %v1000
        %1011 = vmatprep.subr.bf16.mxu0 0
        %1012 = vmatpush1.bf16.msra.mxu0 %v999
        %1013 = vmatprep.subr.bf16.mxu0 0
        %1014 = vmatpush1.bf16.msra.mxu0 %v998
        %1015 = vmatprep.subr.bf16.mxu0 0
        %1016 = vmatpush1.bf16.msra.mxu0 %v997
        %1017 = vmatprep.subr.bf16.mxu0 0
        %1018 = vmatpush1.bf16.msra.mxu0 %v996
        %1019 = vmatprep.subr.bf16.mxu0 0
        %1020 = vmatpush1.bf16.msra.mxu0 %v995
        %1021 = vmatprep.subr.bf16.mxu0 0
        %1022 = vmatpush1.bf16.msra.mxu0 %v994
        %1023 = vmatprep.subr.bf16.mxu0 0
        %1024 = vmatpush1.bf16.msra.mxu0 %v993
        %1025 = vmatprep.subr.bf16.mxu0 0
        %1026 = vmatpush2.bf16.msra.mxu0 0
        %1027 = vmatprep.subr.bf16.mxu0 0
        %1028 = vmatpush2.bf16.msra.mxu0 0
        %1029 = vmatprep.subr.bf16.mxu0 0
        %1030 = vmatpush2.bf16.msra.mxu0 0
        %1031 = vmatprep.subr.bf16.mxu0 0
        %1032 = vmatpush2.bf16.msra.mxu0 0
        %1033 = vmatprep.subr.bf16.mxu0 0
        %1034 = vmatpush2.bf16.msra.mxu0 0
        %1035 = vmatprep.subr.bf16.mxu0 0
        %1036 = vmatpush2.bf16.msra.mxu0 0
        %1037 = vmatprep.subr.bf16.mxu0 0
        %1038 = vmatpush2.bf16.msra.mxu0 0
        %1039 = vmatprep.subr.bf16.mxu0 0
        %1040 = vmatpush2.bf16.msra.mxu0 0
        %1041 = vmatprep.mubr.bf16.mxu0 0
        %1042 = vmatmul.mubr.bf16.gmra.mxu0 %v959
        %v1043 = vpop.f32.mrf.mxu0
        %v1044 = vadd.f32 0.0, %v1043
        %v1045 = vpop.f32.mrf.mxu0
        %v1046 = vpop.f32.mrf.mxu0
        %v1047 = vadd.f32 0.0, %v1046
        %v1048 = vpop.f32.mrf.mxu0
        %1049 = vdwg.mxu0
        %v1050 = vadd.f32 %v930, %v1044
        %v1051 = vadd.f32 %v933, %v1047
        %v1052 = vld [vmem:[%s5] sm:$0x1]
        %v1054 = vlaneseq
        %v1055 = vshrl.u32 %v1054, 7
        %v1056 = vsub.s32 0, %v1055
        %v1057 = vrot.slane %v1052, %v1056
        %v1059 = vmul.f32 %v1050, %v1057
        %v1060 = vmul.f32 %v1051, %v1057
        %v1061 = vld [vmem:[%s6] sm:$0x1]
        %v1063 = vlaneseq
        %v1064 = vshrl.u32 %v1063, 7
        %v1065 = vsub.s32 0, %v1064
        %v1066 = vrot.slane %v1061, %v1065
        %v1068 = vadd.f32 %v1059, %v1066
        %v1069 = vadd.f32 %v1060, %v1066
        %v1070 = vmax.f32 %v1068, 0.0
        %v1071 = vmax.f32 %v1069, 0.0
        %v1072 = vpack.c.bf16 %v1071, %v1070
        %v1074 = vunpack.c.l.b16 %v1072
        %v1075 = vunpack.c.h.b16 %v1072
        %v1076 = vpack.c.b16 %v1074, %v1074
        %v1077 = vpack.c.b16 %v1075, %v1075
        %1080 = vst [vmem:[%s325] sm:$0xf] %v1076
        %1081 = vst [vmem:[%s325 + $0x4] sm:$0xf] %v1077
        %s1082 = sand.u32 %s185, 1
        %s1083 = scalar_lea.sflag [#allocation6], %s1082
        %s1084 = sand.u32 %s185, 1
        %s1085 = smul.addr %s1084, 8
        %s1086 = scalar_lea.vmem [#allocation10], %s1085
        // Predicated region
        $region61: #{tpu_custom_call.1} parent=47 // pred_check
          %p1087 = pneg %p195
        $region62: #{tpu_custom_call.1} parent=47 // pred_check_branch
          %1089 = sbr.rel (%p1087) target = $region64
        $region63: #{tpu_custom_call.1} parent=47 // pred_region
          %s1091 = ssub.s32 128, 128
          %1092 = vsyncadd %s1083, %s1091
          %s1093 = smul.addr %s25, 2
          %s1094 = smul.addr %s1093, 64
          %s1095 = scalar_lea.hbm %s7, %s1094
          %s1096 = sshll.u32 %s1086, 4
          %s1097 = int_to_ptr.vmem [resolvable:$true] %s1096
          %1102 = dma.vmem_to_hbm [thread:$0]  %s1097, 128, %s1095, %s1083, 64, 64, 4
        $region64: #{tpu_custom_call.1} parent=47 // pred_fallthru
          _
      $region48: #{tpu_custom_call.1} parent=5 // pred_fallthru
        _
      %p1103 = scmp.le.s32.totalorder 2, %s20
      // Predicated region
      $region65: #{tpu_custom_call.1} parent=5 // pred_check
        %p1104 = pneg %p1103
      $region66: #{tpu_custom_call.1} parent=5 // pred_check_branch
        %1106 = sbr.rel (%p1104) target = $region68
      $region67: #{tpu_custom_call.1} parent=5 // pred_region
        %s1107 = ssub.s32 %s20, 2
        // Predicated region
        $region69: #{tpu_custom_call.1} parent=67 // pred_check
          %p1108 = pneg %p201
        $region70: #{tpu_custom_call.1} parent=67 // pred_check_branch
          %1110 = sbr.rel (%p1108) target = $region72
        $region71: #{tpu_custom_call.1} parent=67 // pred_region
          %s1111 = sand.u32 %s186, 1
          %s1112 = scalar_lea.sflag [#allocation6], %s1111
          %s1113 = sand.u32 %s186, 1
          %s1114 = smul.addr %s1113, 8
          %s1115 = scalar_lea.vmem [#allocation10], %s1114
          %1116 = dma.done %s1112, 128
        $region72: #{tpu_custom_call.1} parent=67 // pred_fallthru
          _
      $region68: #{tpu_custom_call.1} parent=5 // pred_fallthru
        _
    $region6: #{tpu_custom_call.1} parent=1 // loop_footer
      %s24 = sadd.s32 1, %s20
    $region7: #{tpu_custom_call.1} parent=1 // loop_footer_branch
      %19 = sbr.rel target = $region3
    $region8: #{tpu_custom_call.1} parent=1 // loop_exit
      _
    %1117 = vsyncpa [#allocation5], 1
    %s1118 = scalar_lea.sflag [#allocation5], 1
    %1119 = vsyncpa %s1118, 1
    %1120 = vsyncpa [#allocation8], 1
    %1121 = vsyncpa [#allocation6], 1
    %s1122 = scalar_lea.sflag [#allocation6], 1
    %1123 = vsyncpa %s1122, 1

</llo_original>
